<compile_context>
chip_gen: v6e
topology: v6e:2x2x1
jax: 0.10.0
libtpu: 0.0.40
codegen_flags: <defaults>
</compile_context>

<pallas_src>
import jax
import jax.numpy as jnp
from jax.experimental import pallas as pl
from jax.experimental.pallas import tpu as pltpu

BN_EPS = 1e-5

# Row order of the 1-row parameter vectors inside the shared "VEC" slab block.
_VEC_ROWS = ("b1", "b2", "g3", "be3", "g4", "be4", "g5", "be5", "b6")


def _pad8(n):
    return -(-n // 8) * 8


def _layout(z_size, units, action_num):
    """Slab layout: every block starts at an 8-aligned row, width = LW."""
    LW = max(units, z_size)
    rows_in = _pad8(z_size + action_num)   # contraction rows of the fused W1
    off, r = {}, 0
    off["W1"] = r
    r += rows_in
    for name in ("W2", "W3", "W4", "W5", "W6"):
        off[name] = r
        r += LW
    off["VEC"] = r
    vec_rows = _pad8(len(_VEC_ROWS))
    r += vec_rows
    return off, LW, rows_in, vec_rows, r


def pack_params(params, z_size, units, action_num):
    """One-time packing: fold E into W1 and build a single fp32 slab.

    Call once and reuse the result; this does an E @ W1 matmul plus several
    scatters and must not run on every forward call.
    """
    off, LW, rows_in, vec_rows, total = _layout(z_size, units, action_num)
    f32 = lambda x: jnp.asarray(x, jnp.float32)

    E, W1 = f32(params["E"]), f32(params["W1"])
    # [z ; onehot(a)] @ [W1[:z_size] ; E @ W1[z_size:]]  ==  [z ; E[a]] @ W1
    W1cat = jnp.concatenate([W1[:z_size], E @ W1[z_size:]], axis=0)

    slab = jnp.zeros((total, LW), jnp.float32)

    def put(slab, name, arr, row=0):
        r, c = arr.shape
        r0 = off[name] + row
        return slab.at[r0:r0 + r, :c].set(arr)

    slab = put(slab, "W1", W1cat)
    for name in ("W2", "W3", "W4", "W5", "W6"):
        slab = put(slab, name, f32(params[name]))
    for i, name in enumerate(_VEC_ROWS):
        slab = put(slab, "VEC", f32(params[name]).reshape(1, -1), row=i)
    return slab


def _make_kernel(B, z_size, units, action_num):
    off, LW, rows_in, vec_rows, _ = _layout(z_size, units, action_num)
    V = off["VEC"]
    inv_b = 1.0 / B

    def kernel(x_ref, p_ref, o_ref):
        def mat(name, nrows=LW):
            r0 = off[name]
            return p_ref[r0:r0 + nrows, :]

        vecs = p_ref[V:V + vec_rows, :]          # one aligned load of all rows

        def vec(i):                              # (1, LW) row, broadcasts over B
            return vecs[i:i + 1, :]

        def bn(x, gi, bi):
            # Training-mode BatchNorm (biased variance), gamma folded into the
            # scale.  x and x*x are packed along lanes so a single XLU
            # reduction yields both sum(x) and sum(x^2).
            both = jnp.concatenate([x, x * x], axis=-1)          # (B, 2*LW)
            s = jnp.sum(both, axis=0, keepdims=True) * inv_b     # (1, 2*LW)
            mean, ex2 = s[:, :LW], s[:, LW:]
            var = ex2 - mean * mean
            scale = vec(gi) * jax.lax.rsqrt(var + BN_EPS)
            shift = vec(bi) - mean * scale
            return x * scale + shift

        # ---- act_block + trans_block (Embedding folded into fused Linear 1);
        # x_ref already holds [z | onehot(a)] in its lanes. -------------------
        h = jnp.dot(x_ref[...], mat("W1", rows_in),
                    preferred_element_type=jnp.float32) + vec(0)          # b1
        h = jnp.maximum(h, 0.0)
        zt = jnp.dot(h, mat("W2"),
                     preferred_element_type=jnp.float32) + vec(1)         # b2

        # ---- project_block: Linear, BN, ReLU, Linear, BN --------------------
        # (b3 / b4 omitted: exactly cancelled by training-mode BN.)
        p = jnp.dot(zt, mat("W3"), preferred_element_type=jnp.float32)
        p = jnp.maximum(bn(p, 2, 3), 0.0)                                 # g3, be3
        p = jnp.dot(p, mat("W4"), preferred_element_type=jnp.float32)
        p = bn(p, 4, 5)                                                   # g4, be4

        # ---- project_head_block: Linear, BN, ReLU, Linear --------------------
        # (b5 omitted, as above.)
        q = jnp.dot(p, mat("W5"), preferred_element_type=jnp.float32)
        q = jnp.maximum(bn(q, 6, 7), 0.0)                                 # g5, be5
        q = jnp.dot(q, mat("W6"),
                    preferred_element_type=jnp.float32) + vec(8)          # b6

        o_ref[...] = q.astype(o_ref.dtype)

    return kernel


def make_spr_forward(B, z_size, units, action_num):
    """Returns a jitted forward(z, a, slab) -> (B, units)."""
    _, LW, rows_in, _, _ = _layout(z_size, units, action_num)
    kernel = _make_kernel(B, z_size, units, action_num)
    vspec = pl.BlockSpec(memory_space=pltpu.MemorySpace.VMEM)
    call = pl.pallas_call(
        kernel,
        out_shape=jax.ShapeDtypeStruct((B, LW), jnp.float32),
        in_specs=[vspec, vspec],
        out_specs=vspec,
    )
    oh_w = rows_in - z_size     # one-hot lanes (action_num, zero-padded to 8)

    @jax.jit
    def forward(z, a, slab):
        # Write the action one-hot into the lanes right after z so the kernel
        # sees a single (B, rows_in) tile and does ONE fused head matmul.
        onehot = (jax.lax.broadcasted_iota(jnp.int32, (B, oh_w), 1)
                  == a.reshape(B, 1).astype(jnp.int32)).astype(jnp.float32)
        x_in = jnp.concatenate([z.astype(jnp.float32), onehot], axis=-1)
        return call(x_in, slab)[:, :units]

    return forward


def make_params(key, units, z_size, action_num):
    ks = jax.random.split(key, 20)

    def lin(kw, kb, fan_in, fan_out):
        bound = 1.0 / jnp.sqrt(fan_in)
        w = jax.random.uniform(kw, (fan_in, fan_out), jnp.float32, -bound, bound)
        b = jax.random.uniform(kb, (1, fan_out), jnp.float32, -bound, bound)
        return w, b

    p = {}
    p["E"] = jax.random.normal(ks[0], (action_num, units), jnp.float32)
    p["W1"], p["b1"] = lin(ks[1], ks[2], z_size + units, units)   # LazyLinear
    p["W2"], p["b2"] = lin(ks[3], ks[4], units, z_size)
    p["W3"], p["b3"] = lin(ks[5], ks[6], z_size, units)
    p["g3"] = 1.0 + 0.1 * jax.random.normal(ks[7], (1, units), jnp.float32)
    p["be3"] = 0.1 * jax.random.normal(ks[8], (1, units), jnp.float32)
    p["W4"], p["b4"] = lin(ks[9], ks[10], units, units)
    p["g4"] = 1.0 + 0.1 * jax.random.normal(ks[11], (1, units), jnp.float32)
    p["be4"] = 0.1 * jax.random.normal(ks[12], (1, units), jnp.float32)
    p["W5"], p["b5"] = lin(ks[13], ks[14], units, units)
    p["g5"] = 1.0 + 0.1 * jax.random.normal(ks[15], (1, units), jnp.float32)
    p["be5"] = 0.1 * jax.random.normal(ks[16], (1, units), jnp.float32)
    p["W6"], p["b6"] = lin(ks[17], ks[18], units, units)
    return p


def spr_reference(z, a, p):
    # Pure-JAX reference replicating the PyTorch forward (training-mode BN),
    # including the b3/b4/b5 biases and the un-folded embedding lookup.
    def bn(x, g, b):
        m = jnp.mean(x, axis=0, keepdims=True)
        v = jnp.mean((x - m) ** 2, axis=0, keepdims=True)
        return (x - m) / jnp.sqrt(v + BN_EPS) * g + b

    ae = jnp.take(p["E"], a, axis=0)
    x = jnp.concatenate([z, ae], axis=-1)
    h = jnp.maximum(x @ p["W1"] + p["b1"], 0.0)
    zt = h @ p["W2"] + p["b2"]
    q = bn(zt @ p["W3"] + p["b3"], p["g3"], p["be3"])
    q = jnp.maximum(q, 0.0)
    q = bn(q @ p["W4"] + p["b4"], p["g4"], p["be4"])
    q = bn(q @ p["W5"] + p["b5"], p["g5"], p["be5"])
    q = jnp.maximum(q, 0.0)
    return q @ p["W6"] + p["b6"]


if __name__ == "__main__":
    B, units, z_size, action_num = 8, 32, 16, 4

    key = jax.random.PRNGKey(0)
    kz, ka, kp = jax.random.split(key, 3)
    z = jax.random.normal(kz, (B, z_size), jnp.float32)
    a = jax.random.randint(ka, (B,), 0, action_num, jnp.int32)
    params = make_params(kp, units, z_size, action_num)

    # Pack once (embedding fold + slab build); reuse across forward calls.
    slab = jax.block_until_ready(pack_params(params, z_size, units, action_num))
    forward = make_spr_forward(B, z_size, units, action_num)

    out = forward(z, a, slab)          # first call compiles
    out = forward(z, a, slab)          # steady-state path
    jax.block_until_ready(out)

    ref = spr_reference(z, a, params)
    assert out.shape == (B, units)
    err = jnp.max(jnp.abs(out - ref))
    assert jnp.allclose(out, ref, atol=2e-3, rtol=2e-3), f"max abs diff {err}"
    print("KERNEL_OK")
</pallas_src>

<mosaic_0001>
module attributes {stable_mosaic.version = 11 : i64} {
  func.func @kernel(%arg0: memref<8x24xf32, #tpu.memory_space<vmem>>, %arg1: memref<200x32xf32, #tpu.memory_space<vmem>>, %arg2: memref<8x32xf32, #tpu.memory_space<vmem>>) attributes {dimension_semantics = [], scalar_prefetch = 0 : i64, scratch_operands = 0 : i64, tpu.core_type = #tpu.core_type<tc>} {
    %c184 = arith.constant 184 : index
    %c0 = arith.constant 0 : index
    %0 = vector.load %arg1[%c184, %c0] : memref<200x32xf32, #tpu.memory_space<vmem>>, vector<16x32xf32>
    %c0_0 = arith.constant 0 : index
    %c0_1 = arith.constant 0 : index
    %1 = vector.load %arg0[%c0_0, %c0_1] : memref<8x24xf32, #tpu.memory_space<vmem>>, vector<8x24xf32>
    %c0_2 = arith.constant 0 : index
    %c0_3 = arith.constant 0 : index
    %2 = vector.load %arg1[%c0_2, %c0_3] : memref<200x32xf32, #tpu.memory_space<vmem>>, vector<24x32xf32>
    %cst = arith.constant dense<0.000000e+00> : vector<8x32xf32>
    %3 = tpu.matmul %1, %2, %cst {dimension_numbers = #tpu.dot_dimension_numbers<[1], [0], [0], [1], [0, 0, 1, 1], [], []>} : vector<8x24xf32>, vector<24x32xf32>, vector<8x32xf32> -> vector<8x32xf32>
    %4 = vector.extract_strided_slice %0 {offsets = [0, 0], sizes = [1, 32], strides = [1, 1]} : vector<16x32xf32> to vector<1x32xf32>
    %5 = vector.broadcast %4 : vector<1x32xf32> to vector<8x32xf32>
    %6 = arith.addf %3, %5 : vector<8x32xf32>
    %cst_4 = arith.constant 0.000000e+00 : f32
    %7 = vector.broadcast %cst_4 : f32 to vector<8x32xf32>
    %8 = arith.maximumf %6, %7 : vector<8x32xf32>
    %c24 = arith.constant 24 : index
    %c0_5 = arith.constant 0 : index
    %9 = vector.load %arg1[%c24, %c0_5] : memref<200x32xf32, #tpu.memory_space<vmem>>, vector<32x32xf32>
    %cst_6 = arith.constant dense<0.000000e+00> : vector<8x32xf32>
    %10 = tpu.matmul %8, %9, %cst_6 {dimension_numbers = #tpu.dot_dimension_numbers<[1], [0], [0], [1], [0, 0, 1, 1], [], []>} : vector<8x32xf32>, vector<32x32xf32>, vector<8x32xf32> -> vector<8x32xf32>
    %11 = vector.extract_strided_slice %0 {offsets = [1, 0], sizes = [1, 32], strides = [1, 1]} : vector<16x32xf32> to vector<1x32xf32>
    %12 = vector.broadcast %11 : vector<1x32xf32> to vector<8x32xf32>
    %13 = arith.addf %10, %12 : vector<8x32xf32>
    %c56 = arith.constant 56 : index
    %c0_7 = arith.constant 0 : index
    %14 = vector.load %arg1[%c56, %c0_7] : memref<200x32xf32, #tpu.memory_space<vmem>>, vector<32x32xf32>
    %cst_8 = arith.constant dense<0.000000e+00> : vector<8x32xf32>
    %15 = tpu.matmul %13, %14, %cst_8 {dimension_numbers = #tpu.dot_dimension_numbers<[1], [0], [0], [1], [0, 0, 1, 1], [], []>} : vector<8x32xf32>, vector<32x32xf32>, vector<8x32xf32> -> vector<8x32xf32>
    %16 = arith.mulf %15, %15 : vector<8x32xf32>
    %17 = tpu.concatenate %15, %16 in 1 : vector<8x32xf32>, vector<8x32xf32> -> vector<8x64xf32>
    %cst_9 = arith.constant dense<0.000000e+00> : vector<64xf32>
    %18 = vector.multi_reduction <add>, %17, %cst_9 [0] : vector<8x64xf32> to vector<64xf32>
    %19 = vector.shape_cast %18 : vector<64xf32> to vector<1x64xf32>
    %cst_10 = arith.constant 1.250000e-01 : f32
    %20 = vector.broadcast %cst_10 : f32 to vector<1x64xf32>
    %21 = arith.mulf %19, %20 : vector<1x64xf32>
    %22 = vector.extract_strided_slice %21 {offsets = [0, 0], sizes = [1, 32], strides = [1, 1]} : vector<1x64xf32> to vector<1x32xf32>
    %23 = vector.extract_strided_slice %21 {offsets = [0, 32], sizes = [1, 32], strides = [1, 1]} : vector<1x64xf32> to vector<1x32xf32>
    %24 = arith.mulf %22, %22 : vector<1x32xf32>
    %25 = arith.subf %23, %24 : vector<1x32xf32>
    %26 = vector.extract_strided_slice %0 {offsets = [2, 0], sizes = [1, 32], strides = [1, 1]} : vector<16x32xf32> to vector<1x32xf32>
    %cst_11 = arith.constant 9.99999974E-6 : f32
    %27 = vector.broadcast %cst_11 : f32 to vector<1x32xf32>
    %28 = arith.addf %25, %27 : vector<1x32xf32>
    %29 = math.rsqrt %28 : vector<1x32xf32>
    %30 = arith.mulf %26, %29 : vector<1x32xf32>
    %31 = vector.extract_strided_slice %0 {offsets = [3, 0], sizes = [1, 32], strides = [1, 1]} : vector<16x32xf32> to vector<1x32xf32>
    %32 = arith.mulf %22, %30 : vector<1x32xf32>
    %33 = arith.subf %31, %32 : vector<1x32xf32>
    %34 = vector.broadcast %30 : vector<1x32xf32> to vector<8x32xf32>
    %35 = arith.mulf %15, %34 : vector<8x32xf32>
    %36 = vector.broadcast %33 : vector<1x32xf32> to vector<8x32xf32>
    %37 = arith.addf %35, %36 : vector<8x32xf32>
    %cst_12 = arith.constant 0.000000e+00 : f32
    %38 = vector.broadcast %cst_12 : f32 to vector<8x32xf32>
    %39 = arith.maximumf %37, %38 : vector<8x32xf32>
    %c88 = arith.constant 88 : index
    %c0_13 = arith.constant 0 : index
    %40 = vector.load %arg1[%c88, %c0_13] : memref<200x32xf32, #tpu.memory_space<vmem>>, vector<32x32xf32>
    %cst_14 = arith.constant dense<0.000000e+00> : vector<8x32xf32>
    %41 = tpu.matmul %39, %40, %cst_14 {dimension_numbers = #tpu.dot_dimension_numbers<[1], [0], [0], [1], [0, 0, 1, 1], [], []>} : vector<8x32xf32>, vector<32x32xf32>, vector<8x32xf32> -> vector<8x32xf32>
    %42 = arith.mulf %41, %41 : vector<8x32xf32>
    %43 = tpu.concatenate %41, %42 in 1 : vector<8x32xf32>, vector<8x32xf32> -> vector<8x64xf32>
    %cst_15 = arith.constant dense<0.000000e+00> : vector<64xf32>
    %44 = vector.multi_reduction <add>, %43, %cst_15 [0] : vector<8x64xf32> to vector<64xf32>
    %45 = vector.shape_cast %44 : vector<64xf32> to vector<1x64xf32>
    %cst_16 = arith.constant 1.250000e-01 : f32
    %46 = vector.broadcast %cst_16 : f32 to vector<1x64xf32>
    %47 = arith.mulf %45, %46 : vector<1x64xf32>
    %48 = vector.extract_strided_slice %47 {offsets = [0, 0], sizes = [1, 32], strides = [1, 1]} : vector<1x64xf32> to vector<1x32xf32>
    %49 = vector.extract_strided_slice %47 {offsets = [0, 32], sizes = [1, 32], strides = [1, 1]} : vector<1x64xf32> to vector<1x32xf32>
    %50 = arith.mulf %48, %48 : vector<1x32xf32>
    %51 = arith.subf %49, %50 : vector<1x32xf32>
    %52 = vector.extract_strided_slice %0 {offsets = [4, 0], sizes = [1, 32], strides = [1, 1]} : vector<16x32xf32> to vector<1x32xf32>
    %cst_17 = arith.constant 9.99999974E-6 : f32
    %53 = vector.broadcast %cst_17 : f32 to vector<1x32xf32>
    %54 = arith.addf %51, %53 : vector<1x32xf32>
    %55 = math.rsqrt %54 : vector<1x32xf32>
    %56 = arith.mulf %52, %55 : vector<1x32xf32>
    %57 = vector.extract_strided_slice %0 {offsets = [5, 0], sizes = [1, 32], strides = [1, 1]} : vector<16x32xf32> to vector<1x32xf32>
    %58 = arith.mulf %48, %56 : vector<1x32xf32>
    %59 = arith.subf %57, %58 : vector<1x32xf32>
    %60 = vector.broadcast %56 : vector<1x32xf32> to vector<8x32xf32>
    %61 = arith.mulf %41, %60 : vector<8x32xf32>
    %62 = vector.broadcast %59 : vector<1x32xf32> to vector<8x32xf32>
    %63 = arith.addf %61, %62 : vector<8x32xf32>
    %c120 = arith.constant 120 : index
    %c0_18 = arith.constant 0 : index
    %64 = vector.load %arg1[%c120, %c0_18] : memref<200x32xf32, #tpu.memory_space<vmem>>, vector<32x32xf32>
    %cst_19 = arith.constant dense<0.000000e+00> : vector<8x32xf32>
    %65 = tpu.matmul %63, %64, %cst_19 {dimension_numbers = #tpu.dot_dimension_numbers<[1], [0], [0], [1], [0, 0, 1, 1], [], []>} : vector<8x32xf32>, vector<32x32xf32>, vector<8x32xf32> -> vector<8x32xf32>
    %66 = arith.mulf %65, %65 : vector<8x32xf32>
    %67 = tpu.concatenate %65, %66 in 1 : vector<8x32xf32>, vector<8x32xf32> -> vector<8x64xf32>
    %cst_20 = arith.constant dense<0.000000e+00> : vector<64xf32>
    %68 = vector.multi_reduction <add>, %67, %cst_20 [0] : vector<8x64xf32> to vector<64xf32>
    %69 = vector.shape_cast %68 : vector<64xf32> to vector<1x64xf32>
    %cst_21 = arith.constant 1.250000e-01 : f32
    %70 = vector.broadcast %cst_21 : f32 to vector<1x64xf32>
    %71 = arith.mulf %69, %70 : vector<1x64xf32>
    %72 = vector.extract_strided_slice %71 {offsets = [0, 0], sizes = [1, 32], strides = [1, 1]} : vector<1x64xf32> to vector<1x32xf32>
    %73 = vector.extract_strided_slice %71 {offsets = [0, 32], sizes = [1, 32], strides = [1, 1]} : vector<1x64xf32> to vector<1x32xf32>
    %74 = arith.mulf %72, %72 : vector<1x32xf32>
    %75 = arith.subf %73, %74 : vector<1x32xf32>
    %76 = vector.extract_strided_slice %0 {offsets = [6, 0], sizes = [1, 32], strides = [1, 1]} : vector<16x32xf32> to vector<1x32xf32>
    %cst_22 = arith.constant 9.99999974E-6 : f32
    %77 = vector.broadcast %cst_22 : f32 to vector<1x32xf32>
    %78 = arith.addf %75, %77 : vector<1x32xf32>
    %79 = math.rsqrt %78 : vector<1x32xf32>
    %80 = arith.mulf %76, %79 : vector<1x32xf32>
    %81 = vector.extract_strided_slice %0 {offsets = [7, 0], sizes = [1, 32], strides = [1, 1]} : vector<16x32xf32> to vector<1x32xf32>
    %82 = arith.mulf %72, %80 : vector<1x32xf32>
    %83 = arith.subf %81, %82 : vector<1x32xf32>
    %84 = vector.broadcast %80 : vector<1x32xf32> to vector<8x32xf32>
    %85 = arith.mulf %65, %84 : vector<8x32xf32>
    %86 = vector.broadcast %83 : vector<1x32xf32> to vector<8x32xf32>
    %87 = arith.addf %85, %86 : vector<8x32xf32>
    %cst_23 = arith.constant 0.000000e+00 : f32
    %88 = vector.broadcast %cst_23 : f32 to vector<8x32xf32>
    %89 = arith.maximumf %87, %88 : vector<8x32xf32>
    %c152 = arith.constant 152 : index
    %c0_24 = arith.constant 0 : index
    %90 = vector.load %arg1[%c152, %c0_24] : memref<200x32xf32, #tpu.memory_space<vmem>>, vector<32x32xf32>
    %cst_25 = arith.constant dense<0.000000e+00> : vector<8x32xf32>
    %91 = tpu.matmul %89, %90, %cst_25 {dimension_numbers = #tpu.dot_dimension_numbers<[1], [0], [0], [1], [0, 0, 1, 1], [], []>} : vector<8x32xf32>, vector<32x32xf32>, vector<8x32xf32> -> vector<8x32xf32>
    %92 = vector.extract_strided_slice %0 {offsets = [8, 0], sizes = [1, 32], strides = [1, 1]} : vector<16x32xf32> to vector<1x32xf32>
    %93 = vector.broadcast %92 : vector<1x32xf32> to vector<8x32xf32>
    %94 = arith.addf %91, %93 : vector<8x32xf32>
    %c0_26 = arith.constant 0 : index
    %c0_27 = arith.constant 0 : index
    %95 = vector.load %arg2[%c0_26, %c0_27] : memref<8x32xf32, #tpu.memory_space<vmem>>, vector<8x32xf32>
    tpu.vector_store %arg2[%c0_26, %c0_27], %94 {strides = array<i32>} : memref<8x32xf32, #tpu.memory_space<vmem>>, vector<8x32xf32>,
    return
  }
}

</mosaic_0001>

<llo_original>
// kernel: forward.1
$region0: #{forward.1}
  #allocation0 [shape = 'u32[]', space=smem, size = 0x4, offset = 0x4, fixed_abs, tag = 'smem constant byte address 0x4 - core index']
  #allocation1 [shape = 'u32[144,128]{1,0:T(1,128)}', space=vmem, size = 0x12000, scoped, tag = 'internal scratch']
  %s0 = inlined_call_operand.vmem [shape: f32[8,24], index: 0, kind: input, shape index: {}]
  %s1 = inlined_call_operand.vmem [shape: f32[200,32], index: 1, kind: input, shape index: {}]
  %s2 = inlined_call_operand.hbm [shape: f32[8,32], index: 2, kind: output, shape index: {}]
  %s3 = sld [smem:[#allocation0]]
  $region18: #{forward.1} parent=0
    _
  %s5 = ssub.s32 1, %s3
  %s6 = scalar_select 0, %s5, %s3
  $region1: #{forward.1} parent=0
    #allocation2 [shape = 'u8[4096]{0}', space=vmem, size = 0x1000, scoped, tag = 'output window, operand 0, single buffered']
    #allocation3 [shape = 's32[1]{0}', space=sflag, size = 0x4, scoped, tag = 'scoped memory for forward.1']
    %7 = vsyncpa [#allocation3], 0
    // Predicated region
    $region2: #{forward.1} parent=1 // pred_check
      _
    $region3: #{forward.1} parent=1 // pred_check_branch
      %9 = sbr.rel (0) target = $region5
    $region4: #{forward.1} parent=1 // pred_region
      _
    $region5: #{forward.1} parent=1 // pred_fallthru
      _
    // Predicated region
    $region6: #{forward.1} parent=1 // pred_check
      _
    $region7: #{forward.1} parent=1 // pred_check_branch
      %11 = sbr.rel (0) target = $region9
    $region8: #{forward.1} parent=1 // pred_region
      _
    $region9: #{forward.1} parent=1 // pred_fallthru
      _
    %v12 = vld [vmem:[%s1 + $0xb8] sm:$0xff]
    %v13 = vld [vmem:[%s1 + $0xc0] sm:$0xff]
    %v14 = vld [vmem:[%s0] sm:$0xff]
    %v15 = vld [vmem:[%s1] sm:$0xff]
    %v16 = vld [vmem:[%s1 + $0x8] sm:$0xff]
    %v17 = vld [vmem:[%s1 + $0x10] sm:$0xff]
    %v18 = vlaneseq
    %v19 = vshrl.u32 %v18, 7
    %v20 = vsub.s32 0, %v19
    %v21 = vrot.slane %v12, %v20
    %vm22 = vcmask 195584
    %v24 = vsel %vm22, %v14, 0
    %26 = vmatprep.subr.mxu0 0.0
    %27 = vmatpush1.msra.mxu0 0.0
    %28 = vmatprep.subr.mxu0 0.0
    %29 = vmatpush1.msra.mxu0 0.0
    %30 = vmatprep.subr.mxu0 0.0
    %31 = vmatpush1.msra.mxu0 0.0
    %32 = vmatprep.subr.mxu0 0.0
    %33 = vmatpush1.msra.mxu0 0.0
    %34 = vmatprep.subr.mxu0 0.0
    %35 = vmatpush1.msra.mxu0 0.0
    %36 = vmatprep.subr.mxu0 0.0
    %37 = vmatpush1.msra.mxu0 0.0
    %38 = vmatprep.subr.mxu0 0.0
    %39 = vmatpush1.msra.mxu0 0.0
    %40 = vmatprep.subr.mxu0 0.0
    %41 = vmatpush1.msra.mxu0 0.0
    %42 = vmatprep.subr.mxu0 0.0
    %43 = vmatpush1.msra.mxu0 0.0
    %44 = vmatprep.subr.mxu0 0.0
    %45 = vmatpush1.msra.mxu0 0.0
    %46 = vmatprep.subr.mxu0 0.0
    %47 = vmatpush1.msra.mxu0 0.0
    %48 = vmatprep.subr.mxu0 0.0
    %49 = vmatpush1.msra.mxu0 0.0
    %50 = vmatprep.subr.mxu0 0.0
    %51 = vmatpush1.msra.mxu0 0.0
    %52 = vmatprep.subr.mxu0 0.0
    %53 = vmatpush1.msra.mxu0 %v17
    %54 = vmatprep.subr.mxu0 0.0
    %55 = vmatpush1.msra.mxu0 %v16
    %56 = vmatprep.subr.mxu0 0.0
    %57 = vmatpush1.msra.mxu0 %v15
    %58 = vmatprep.subr.mxu0 0.0
    %59 = vmatpush2.msra.mxu0 0.0
    %60 = vmatprep.subr.mxu0 0.0
    %61 = vmatpush2.msra.mxu0 0.0
    %62 = vmatprep.subr.mxu0 0.0
    %63 = vmatpush2.msra.mxu0 0.0
    %64 = vmatprep.subr.mxu0 0.0
    %65 = vmatpush2.msra.mxu0 0.0
    %66 = vmatprep.subr.mxu0 0.0
    %67 = vmatpush2.msra.mxu0 0.0
    %68 = vmatprep.subr.mxu0 0.0
    %69 = vmatpush2.msra.mxu0 0.0
    %70 = vmatprep.subr.mxu0 0.0
    %71 = vmatpush2.msra.mxu0 0.0
    %72 = vmatprep.subr.mxu0 0.0
    %73 = vmatpush2.msra.mxu0 0.0
    %74 = vmatprep.subr.mxu0 0.0
    %75 = vmatpush2.msra.mxu0 0.0
    %76 = vmatprep.subr.mxu0 0.0
    %77 = vmatpush2.msra.mxu0 0.0
    %78 = vmatprep.subr.mxu0 0.0
    %79 = vmatpush2.msra.mxu0 0.0
    %80 = vmatprep.subr.mxu0 0.0
    %81 = vmatpush2.msra.mxu0 0.0
    %82 = vmatprep.subr.mxu0 0.0
    %83 = vmatpush2.msra.mxu0 0.0
    %84 = vmatprep.subr.mxu0 0.0
    %85 = vmatpush2.msra.mxu0 0.0
    %86 = vmatprep.subr.mxu0 0.0
    %87 = vmatpush2.msra.mxu0 0.0
    %88 = vmatprep.subr.mxu0 0.0
    %89 = vmatpush2.msra.mxu0 0.0
    %90 = vmatprep.mubr.f32.mxu0 0.0
    %91 = vmatmul.mubr.f32.gmra.mxu0 %v24
    %v92 = vpop.f32.mrf.mxu0
    %v93 = vadd.f32 %v21, %v92
    %v94 = vpop.f32.mrf.mxu0
    %95 = vdwg.mxu0
    %v96 = vmax.f32 %v93, 0.0
    %v97 = vld [vmem:[%s1 + $0x18] sm:$0xff]
    %v98 = vld [vmem:[%s1 + $0x20] sm:$0xff]
    %v99 = vld [vmem:[%s1 + $0x28] sm:$0xff]
    %v100 = vld [vmem:[%s1 + $0x30] sm:$0xff]
    %v101 = vlaneseq
    %v102 = vshrl.u32 %v101, 7
    %v103 = vsub.s32 1, %v102
    %v104 = vrot.slane %v12, %v103
    %vm105 = vcmask 261120
    %v107 = vsel %vm105, %v96, 0
    %109 = vmatprep.subr.mxu0 0.0
    %110 = vmatpush1.msra.mxu0 0.0
    %111 = vmatprep.subr.mxu0 0.0
    %112 = vmatpush1.msra.mxu0 0.0
    %113 = vmatprep.subr.mxu0 0.0
    %114 = vmatpush1.msra.mxu0 0.0
    %115 = vmatprep.subr.mxu0 0.0
    %116 = vmatpush1.msra.mxu0 0.0
    %117 = vmatprep.subr.mxu0 0.0
    %118 = vmatpush1.msra.mxu0 0.0
    %119 = vmatprep.subr.mxu0 0.0
    %120 = vmatpush1.msra.mxu0 0.0
    %121 = vmatprep.subr.mxu0 0.0
    %122 = vmatpush1.msra.mxu0 0.0
    %123 = vmatprep.subr.mxu0 0.0
    %124 = vmatpush1.msra.mxu0 0.0
    %125 = vmatprep.subr.mxu0 0.0
    %126 = vmatpush1.msra.mxu0 0.0
    %127 = vmatprep.subr.mxu0 0.0
    %128 = vmatpush1.msra.mxu0 0.0
    %129 = vmatprep.subr.mxu0 0.0
    %130 = vmatpush1.msra.mxu0 0.0
    %131 = vmatprep.subr.mxu0 0.0
    %132 = vmatpush1.msra.mxu0 0.0
    %133 = vmatprep.subr.mxu0 0.0
    %134 = vmatpush1.msra.mxu0 %v100
    %135 = vmatprep.subr.mxu0 0.0
    %136 = vmatpush1.msra.mxu0 %v99
    %137 = vmatprep.subr.mxu0 0.0
    %138 = vmatpush1.msra.mxu0 %v98
    %139 = vmatprep.subr.mxu0 0.0
    %140 = vmatpush1.msra.mxu0 %v97
    %141 = vmatprep.subr.mxu0 0.0
    %142 = vmatpush2.msra.mxu0 0.0
    %143 = vmatprep.subr.mxu0 0.0
    %144 = vmatpush2.msra.mxu0 0.0
    %145 = vmatprep.subr.mxu0 0.0
    %146 = vmatpush2.msra.mxu0 0.0
    %147 = vmatprep.subr.mxu0 0.0
    %148 = vmatpush2.msra.mxu0 0.0
    %149 = vmatprep.subr.mxu0 0.0
    %150 = vmatpush2.msra.mxu0 0.0
    %151 = vmatprep.subr.mxu0 0.0
    %152 = vmatpush2.msra.mxu0 0.0
    %153 = vmatprep.subr.mxu0 0.0
    %154 = vmatpush2.msra.mxu0 0.0
    %155 = vmatprep.subr.mxu0 0.0
    %156 = vmatpush2.msra.mxu0 0.0
    %157 = vmatprep.subr.mxu0 0.0
    %158 = vmatpush2.msra.mxu0 0.0
    %159 = vmatprep.subr.mxu0 0.0
    %160 = vmatpush2.msra.mxu0 0.0
    %161 = vmatprep.subr.mxu0 0.0
    %162 = vmatpush2.msra.mxu0 0.0
    %163 = vmatprep.subr.mxu0 0.0
    %164 = vmatpush2.msra.mxu0 0.0
    %165 = vmatprep.subr.mxu0 0.0
    %166 = vmatpush2.msra.mxu0 0.0
    %167 = vmatprep.subr.mxu0 0.0
    %168 = vmatpush2.msra.mxu0 0.0
    %169 = vmatprep.subr.mxu0 0.0
    %170 = vmatpush2.msra.mxu0 0.0
    %171 = vmatprep.subr.mxu0 0.0
    %172 = vmatpush2.msra.mxu0 0.0
    %173 = vmatprep.mubr.f32.mxu0 0.0
    %174 = vmatmul.mubr.f32.gmra.mxu0 %v107
    %v175 = vpop.f32.mrf.mxu0
    %v176 = vadd.f32 %v104, %v175
    %v177 = vpop.f32.mrf.mxu0
    %178 = vdwg.mxu0
    %v179 = vld [vmem:[%s1 + $0x38] sm:$0xff]
    %v180 = vld [vmem:[%s1 + $0x40] sm:$0xff]
    %v181 = vld [vmem:[%s1 + $0x48] sm:$0xff]
    %v182 = vld [vmem:[%s1 + $0x50] sm:$0xff]
    %v184 = vsel %vm105, %v176, 0
    %186 = vmatprep.subr.mxu0 0.0
    %187 = vmatpush1.msra.mxu0 0.0
    %188 = vmatprep.subr.mxu0 0.0
    %189 = vmatpush1.msra.mxu0 0.0
    %190 = vmatprep.subr.mxu0 0.0
    %191 = vmatpush1.msra.mxu0 0.0
    %192 = vmatprep.subr.mxu0 0.0
    %193 = vmatpush1.msra.mxu0 0.0
    %194 = vmatprep.subr.mxu0 0.0
    %195 = vmatpush1.msra.mxu0 0.0
    %196 = vmatprep.subr.mxu0 0.0
    %197 = vmatpush1.msra.mxu0 0.0
    %198 = vmatprep.subr.mxu0 0.0
    %199 = vmatpush1.msra.mxu0 0.0
    %200 = vmatprep.subr.mxu0 0.0
    %201 = vmatpush1.msra.mxu0 0.0
    %202 = vmatprep.subr.mxu0 0.0
    %203 = vmatpush1.msra.mxu0 0.0
    %204 = vmatprep.subr.mxu0 0.0
    %205 = vmatpush1.msra.mxu0 0.0
    %206 = vmatprep.subr.mxu0 0.0
    %207 = vmatpush1.msra.mxu0 0.0
    %208 = vmatprep.subr.mxu0 0.0
    %209 = vmatpush1.msra.mxu0 0.0
    %210 = vmatprep.subr.mxu0 0.0
    %211 = vmatpush1.msra.mxu0 %v182
    %212 = vmatprep.subr.mxu0 0.0
    %213 = vmatpush1.msra.mxu0 %v181
    %214 = vmatprep.subr.mxu0 0.0
    %215 = vmatpush1.msra.mxu0 %v180
    %216 = vmatprep.subr.mxu0 0.0
    %217 = vmatpush1.msra.mxu0 %v179
    %218 = vmatprep.subr.mxu0 0.0
    %219 = vmatpush2.msra.mxu0 0.0
    %220 = vmatprep.subr.mxu0 0.0
    %221 = vmatpush2.msra.mxu0 0.0
    %222 = vmatprep.subr.mxu0 0.0
    %223 = vmatpush2.msra.mxu0 0.0
    %224 = vmatprep.subr.mxu0 0.0
    %225 = vmatpush2.msra.mxu0 0.0
    %226 = vmatprep.subr.mxu0 0.0
    %227 = vmatpush2.msra.mxu0 0.0
    %228 = vmatprep.subr.mxu0 0.0
    %229 = vmatpush2.msra.mxu0 0.0
    %230 = vmatprep.subr.mxu0 0.0
    %231 = vmatpush2.msra.mxu0 0.0
    %232 = vmatprep.subr.mxu0 0.0
    %233 = vmatpush2.msra.mxu0 0.0
    %234 = vmatprep.subr.mxu0 0.0
    %235 = vmatpush2.msra.mxu0 0.0
    %236 = vmatprep.subr.mxu0 0.0
    %237 = vmatpush2.msra.mxu0 0.0
    %238 = vmatprep.subr.mxu0 0.0
    %239 = vmatpush2.msra.mxu0 0.0
    %240 = vmatprep.subr.mxu0 0.0
    %241 = vmatpush2.msra.mxu0 0.0
    %242 = vmatprep.subr.mxu0 0.0
    %243 = vmatpush2.msra.mxu0 0.0
    %244 = vmatprep.subr.mxu0 0.0
    %245 = vmatpush2.msra.mxu0 0.0
    %246 = vmatprep.subr.mxu0 0.0
    %247 = vmatpush2.msra.mxu0 0.0
    %248 = vmatprep.subr.mxu0 0.0
    %249 = vmatpush2.msra.mxu0 0.0
    %250 = vmatprep.mubr.f32.mxu0 0.0
    %251 = vmatmul.mubr.f32.gmra.mxu0 %v184
    %v252 = vpop.f32.mrf.mxu0
    %v253 = vadd.f32 0.0, %v252
    %v254 = vpop.f32.mrf.mxu0
    %255 = vdwg.mxu0
    %v256 = vmul.f32 %v253, %v253
    %258 = vrot.lane.b32.xlu0 %v256, 32
    %v259 = vpop.permute.xlu0 %258
    %v261 = vsel %vm105, %v253, %v259
    %vm262 = vcmask 523264
    %v263 = vsel %vm262, %v261, 0.0
    %v264 = vrot.slane %v263, 4
    %v265 = vadd.f32 %v263, %v264
    %v266 = vrot.slane %v265, 2
    %v267 = vadd.f32 %v265, %v266
    %v268 = vrot.slane %v267, 1
    %v269 = vadd.f32 %v267, %v268
    %v270 = vmul.f32 %v269, 0.125
    %v271 = vmul.f32 %v270, %v270
    %273 = vrot.lane.b32.xlu0 %v271, 32
    %v274 = vpop.permute.xlu0 %273
    %v276 = vsub.f32 %v270, %v274
    %v277 = vadd.f32 %v276, 1e-05
    %v278 = vrsqrt.pop %v277
    %v280 = vrot.slane %v278, 6
    %281 = vrot.lane.b32.xlu0 %v280, 96
    %v282 = vpop.permute.xlu0 %281
    %v284 = vmul.f32 %v12, %v282
    %v285 = vmul.f32 %v270, %v284
    %v287 = vrot.slane %v285, 7
    %v289 = vsub.f32 %v12, %v287
    %v290 = vlaneseq
    %v291 = vshrl.u32 %v290, 7
    %v292 = vsub.s32 2, %v291
    %v293 = vrot.slane %v284, %v292
    %v294 = vmul.f32 %v253, %v293
    %v295 = vlaneseq
    %v296 = vshrl.u32 %v295, 7
    %v297 = vsub.s32 3, %v296
    %v298 = vrot.slane %v289, %v297
    %v299 = vadd.f32 %v294, %v298
    %v300 = vmax.f32 %v299, 0.0
    %v301 = vld [vmem:[%s1 + $0x58] sm:$0xff]
    %v302 = vld [vmem:[%s1 + $0x60] sm:$0xff]
    %v303 = vld [vmem:[%s1 + $0x68] sm:$0xff]
    %v304 = vld [vmem:[%s1 + $0x70] sm:$0xff]
    %v306 = vsel %vm105, %v300, 0
    %308 = vmatprep.subr.mxu0 0.0
    %309 = vmatpush1.msra.mxu0 0.0
    %310 = vmatprep.subr.mxu0 0.0
    %311 = vmatpush1.msra.mxu0 0.0
    %312 = vmatprep.subr.mxu0 0.0
    %313 = vmatpush1.msra.mxu0 0.0
    %314 = vmatprep.subr.mxu0 0.0
    %315 = vmatpush1.msra.mxu0 0.0
    %316 = vmatprep.subr.mxu0 0.0
    %317 = vmatpush1.msra.mxu0 0.0
    %318 = vmatprep.subr.mxu0 0.0
    %319 = vmatpush1.msra.mxu0 0.0
    %320 = vmatprep.subr.mxu0 0.0
    %321 = vmatpush1.msra.mxu0 0.0
    %322 = vmatprep.subr.mxu0 0.0
    %323 = vmatpush1.msra.mxu0 0.0
    %324 = vmatprep.subr.mxu0 0.0
    %325 = vmatpush1.msra.mxu0 0.0
    %326 = vmatprep.subr.mxu0 0.0
    %327 = vmatpush1.msra.mxu0 0.0
    %328 = vmatprep.subr.mxu0 0.0
    %329 = vmatpush1.msra.mxu0 0.0
    %330 = vmatprep.subr.mxu0 0.0
    %331 = vmatpush1.msra.mxu0 0.0
    %332 = vmatprep.subr.mxu0 0.0
    %333 = vmatpush1.msra.mxu0 %v304
    %334 = vmatprep.subr.mxu0 0.0
    %335 = vmatpush1.msra.mxu0 %v303
    %336 = vmatprep.subr.mxu0 0.0
    %337 = vmatpush1.msra.mxu0 %v302
    %338 = vmatprep.subr.mxu0 0.0
    %339 = vmatpush1.msra.mxu0 %v301
    %340 = vmatprep.subr.mxu0 0.0
    %341 = vmatpush2.msra.mxu0 0.0
    %342 = vmatprep.subr.mxu0 0.0
    %343 = vmatpush2.msra.mxu0 0.0
    %344 = vmatprep.subr.mxu0 0.0
    %345 = vmatpush2.msra.mxu0 0.0
    %346 = vmatprep.subr.mxu0 0.0
    %347 = vmatpush2.msra.mxu0 0.0
    %348 = vmatprep.subr.mxu0 0.0
    %349 = vmatpush2.msra.mxu0 0.0
    %350 = vmatprep.subr.mxu0 0.0
    %351 = vmatpush2.msra.mxu0 0.0
    %352 = vmatprep.subr.mxu0 0.0
    %353 = vmatpush2.msra.mxu0 0.0
    %354 = vmatprep.subr.mxu0 0.0
    %355 = vmatpush2.msra.mxu0 0.0
    %356 = vmatprep.subr.mxu0 0.0
    %357 = vmatpush2.msra.mxu0 0.0
    %358 = vmatprep.subr.mxu0 0.0
    %359 = vmatpush2.msra.mxu0 0.0
    %360 = vmatprep.subr.mxu0 0.0
    %361 = vmatpush2.msra.mxu0 0.0
    %362 = vmatprep.subr.mxu0 0.0
    %363 = vmatpush2.msra.mxu0 0.0
    %364 = vmatprep.subr.mxu0 0.0
    %365 = vmatpush2.msra.mxu0 0.0
    %366 = vmatprep.subr.mxu0 0.0
    %367 = vmatpush2.msra.mxu0 0.0
    %368 = vmatprep.subr.mxu0 0.0
    %369 = vmatpush2.msra.mxu0 0.0
    %370 = vmatprep.subr.mxu0 0.0
    %371 = vmatpush2.msra.mxu0 0.0
    %372 = vmatprep.mubr.f32.mxu0 0.0
    %373 = vmatmul.mubr.f32.gmra.mxu0 %v306
    %v374 = vpop.f32.mrf.mxu0
    %v375 = vadd.f32 0.0, %v374
    %v376 = vpop.f32.mrf.mxu0
    %377 = vdwg.mxu0
    %v378 = vmul.f32 %v375, %v375
    %380 = vrot.lane.b32.xlu0 %v378, 32
    %v381 = vpop.permute.xlu0 %380
    %v383 = vsel %vm105, %v375, %v381
    %v384 = vsel %vm262, %v383, 0.0
    %v385 = vrot.slane %v384, 4
    %v386 = vadd.f32 %v384, %v385
    %v387 = vrot.slane %v386, 2
    %v388 = vadd.f32 %v386, %v387
    %v389 = vrot.slane %v388, 1
    %v390 = vadd.f32 %v388, %v389
    %v391 = vmul.f32 %v390, 0.125
    %v392 = vmul.f32 %v391, %v391
    %394 = vrot.lane.b32.xlu0 %v392, 32
    %v395 = vpop.permute.xlu0 %394
    %v397 = vsub.f32 %v391, %v395
    %v398 = vadd.f32 %v397, 1e-05
    %v399 = vrsqrt.pop %v398
    %v401 = vrot.slane %v399, 4
    %402 = vrot.lane.b32.xlu0 %v401, 96
    %v403 = vpop.permute.xlu0 %402
    %v405 = vmul.f32 %v12, %v403
    %v406 = vmul.f32 %v391, %v405
    %v408 = vrot.slane %v406, 7
    %v410 = vsub.f32 %v12, %v408
    %v411 = vlaneseq
    %v412 = vshrl.u32 %v411, 7
    %v413 = vsub.s32 4, %v412
    %v414 = vrot.slane %v405, %v413
    %v415 = vmul.f32 %v375, %v414
    %v416 = vlaneseq
    %v417 = vshrl.u32 %v416, 7
    %v418 = vsub.s32 5, %v417
    %v419 = vrot.slane %v410, %v418
    %v420 = vadd.f32 %v415, %v419
    %v421 = vld [vmem:[%s1 + $0x78] sm:$0xff]
    %v422 = vld [vmem:[%s1 + $0x80] sm:$0xff]
    %v423 = vld [vmem:[%s1 + $0x88] sm:$0xff]
    %v424 = vld [vmem:[%s1 + $0x90] sm:$0xff]
    %v426 = vsel %vm105, %v420, 0
    %428 = vmatprep.subr.mxu0 0.0
    %429 = vmatpush1.msra.mxu0 0.0
    %430 = vmatprep.subr.mxu0 0.0
    %431 = vmatpush1.msra.mxu0 0.0
    %432 = vmatprep.subr.mxu0 0.0
    %433 = vmatpush1.msra.mxu0 0.0
    %434 = vmatprep.subr.mxu0 0.0
    %435 = vmatpush1.msra.mxu0 0.0
    %436 = vmatprep.subr.mxu0 0.0
    %437 = vmatpush1.msra.mxu0 0.0
    %438 = vmatprep.subr.mxu0 0.0
    %439 = vmatpush1.msra.mxu0 0.0
    %440 = vmatprep.subr.mxu0 0.0
    %441 = vmatpush1.msra.mxu0 0.0
    %442 = vmatprep.subr.mxu0 0.0
    %443 = vmatpush1.msra.mxu0 0.0
    %444 = vmatprep.subr.mxu0 0.0
    %445 = vmatpush1.msra.mxu0 0.0
    %446 = vmatprep.subr.mxu0 0.0
    %447 = vmatpush1.msra.mxu0 0.0
    %448 = vmatprep.subr.mxu0 0.0
    %449 = vmatpush1.msra.mxu0 0.0
    %450 = vmatprep.subr.mxu0 0.0
    %451 = vmatpush1.msra.mxu0 0.0
    %452 = vmatprep.subr.mxu0 0.0
    %453 = vmatpush1.msra.mxu0 %v424
    %454 = vmatprep.subr.mxu0 0.0
    %455 = vmatpush1.msra.mxu0 %v423
    %456 = vmatprep.subr.mxu0 0.0
    %457 = vmatpush1.msra.mxu0 %v422
    %458 = vmatprep.subr.mxu0 0.0
    %459 = vmatpush1.msra.mxu0 %v421
    %460 = vmatprep.subr.mxu0 0.0
    %461 = vmatpush2.msra.mxu0 0.0
    %462 = vmatprep.subr.mxu0 0.0
    %463 = vmatpush2.msra.mxu0 0.0
    %464 = vmatprep.subr.mxu0 0.0
    %465 = vmatpush2.msra.mxu0 0.0
    %466 = vmatprep.subr.mxu0 0.0
    %467 = vmatpush2.msra.mxu0 0.0
    %468 = vmatprep.subr.mxu0 0.0
    %469 = vmatpush2.msra.mxu0 0.0
    %470 = vmatprep.subr.mxu0 0.0
    %471 = vmatpush2.msra.mxu0 0.0
    %472 = vmatprep.subr.mxu0 0.0
    %473 = vmatpush2.msra.mxu0 0.0
    %474 = vmatprep.subr.mxu0 0.0
    %475 = vmatpush2.msra.mxu0 0.0
    %476 = vmatprep.subr.mxu0 0.0
    %477 = vmatpush2.msra.mxu0 0.0
    %478 = vmatprep.subr.mxu0 0.0
    %479 = vmatpush2.msra.mxu0 0.0
    %480 = vmatprep.subr.mxu0 0.0
    %481 = vmatpush2.msra.mxu0 0.0
    %482 = vmatprep.subr.mxu0 0.0
    %483 = vmatpush2.msra.mxu0 0.0
    %484 = vmatprep.subr.mxu0 0.0
    %485 = vmatpush2.msra.mxu0 0.0
    %486 = vmatprep.subr.mxu0 0.0
    %487 = vmatpush2.msra.mxu0 0.0
    %488 = vmatprep.subr.mxu0 0.0
    %489 = vmatpush2.msra.mxu0 0.0
    %490 = vmatprep.subr.mxu0 0.0
    %491 = vmatpush2.msra.mxu0 0.0
    %492 = vmatprep.mubr.f32.mxu0 0.0
    %493 = vmatmul.mubr.f32.gmra.mxu0 %v426
    %v494 = vpop.f32.mrf.mxu0
    %v495 = vadd.f32 0.0, %v494
    %v496 = vpop.f32.mrf.mxu0
    %497 = vdwg.mxu0
    %v498 = vmul.f32 %v495, %v495
    %500 = vrot.lane.b32.xlu0 %v498, 32
    %v501 = vpop.permute.xlu0 %500
    %v503 = vsel %vm105, %v495, %v501
    %v504 = vsel %vm262, %v503, 0.0
    %v505 = vrot.slane %v504, 4
    %v506 = vadd.f32 %v504, %v505
    %v507 = vrot.slane %v506, 2
    %v508 = vadd.f32 %v506, %v507
    %v509 = vrot.slane %v508, 1
    %v510 = vadd.f32 %v508, %v509
    %v511 = vmul.f32 %v510, 0.125
    %v512 = vmul.f32 %v511, %v511
    %514 = vrot.lane.b32.xlu0 %v512, 32
    %v515 = vpop.permute.xlu0 %514
    %v517 = vsub.f32 %v511, %v515
    %v518 = vadd.f32 %v517, 1e-05
    %v519 = vrsqrt.pop %v518
    %v521 = vrot.slane %v519, 2
    %522 = vrot.lane.b32.xlu0 %v521, 96
    %v523 = vpop.permute.xlu0 %522
    %v525 = vmul.f32 %v12, %v523
    %v526 = vmul.f32 %v511, %v525
    %v528 = vrot.slane %v526, 7
    %v530 = vsub.f32 %v12, %v528
    %v531 = vlaneseq
    %v532 = vshrl.u32 %v531, 7
    %v533 = vsub.s32 6, %v532
    %v534 = vrot.slane %v525, %v533
    %v535 = vmul.f32 %v495, %v534
    %v536 = vlaneseq
    %v537 = vshrl.u32 %v536, 7
    %v538 = vsub.s32 7, %v537
    %v539 = vrot.slane %v530, %v538
    %v540 = vadd.f32 %v535, %v539
    %v541 = vmax.f32 %v540, 0.0
    %v542 = vld [vmem:[%s1 + $0x98] sm:$0xff]
    %v543 = vld [vmem:[%s1 + $0xa0] sm:$0xff]
    %v544 = vld [vmem:[%s1 + $0xa8] sm:$0xff]
    %v545 = vld [vmem:[%s1 + $0xb0] sm:$0xff]
    %v546 = vlaneseq
    %v547 = vshrl.u32 %v546, 7
    %v548 = vsub.s32 0, %v547
    %v549 = vrot.slane %v13, %v548
    %v551 = vsel %vm105, %v541, 0
    %553 = vmatprep.subr.mxu0 0.0
    %554 = vmatpush1.msra.mxu0 0.0
    %555 = vmatprep.subr.mxu0 0.0
    %556 = vmatpush1.msra.mxu0 0.0
    %557 = vmatprep.subr.mxu0 0.0
    %558 = vmatpush1.msra.mxu0 0.0
    %559 = vmatprep.subr.mxu0 0.0
    %560 = vmatpush1.msra.mxu0 0.0
    %561 = vmatprep.subr.mxu0 0.0
    %562 = vmatpush1.msra.mxu0 0.0
    %563 = vmatprep.subr.mxu0 0.0
    %564 = vmatpush1.msra.mxu0 0.0
    %565 = vmatprep.subr.mxu0 0.0
    %566 = vmatpush1.msra.mxu0 0.0
    %567 = vmatprep.subr.mxu0 0.0
    %568 = vmatpush1.msra.mxu0 0.0
    %569 = vmatprep.subr.mxu0 0.0
    %570 = vmatpush1.msra.mxu0 0.0
    %571 = vmatprep.subr.mxu0 0.0
    %572 = vmatpush1.msra.mxu0 0.0
    %573 = vmatprep.subr.mxu0 0.0
    %574 = vmatpush1.msra.mxu0 0.0
    %575 = vmatprep.subr.mxu0 0.0
    %576 = vmatpush1.msra.mxu0 0.0
    %577 = vmatprep.subr.mxu0 0.0
    %578 = vmatpush1.msra.mxu0 %v545
    %579 = vmatprep.subr.mxu0 0.0
    %580 = vmatpush1.msra.mxu0 %v544
    %581 = vmatprep.subr.mxu0 0.0
    %582 = vmatpush1.msra.mxu0 %v543
    %583 = vmatprep.subr.mxu0 0.0
    %584 = vmatpush1.msra.mxu0 %v542
    %585 = vmatprep.subr.mxu0 0.0
    %586 = vmatpush2.msra.mxu0 0.0
    %587 = vmatprep.subr.mxu0 0.0
    %588 = vmatpush2.msra.mxu0 0.0
    %589 = vmatprep.subr.mxu0 0.0
    %590 = vmatpush2.msra.mxu0 0.0
    %591 = vmatprep.subr.mxu0 0.0
    %592 = vmatpush2.msra.mxu0 0.0
    %593 = vmatprep.subr.mxu0 0.0
    %594 = vmatpush2.msra.mxu0 0.0
    %595 = vmatprep.subr.mxu0 0.0
    %596 = vmatpush2.msra.mxu0 0.0
    %597 = vmatprep.subr.mxu0 0.0
    %598 = vmatpush2.msra.mxu0 0.0
    %599 = vmatprep.subr.mxu0 0.0
    %600 = vmatpush2.msra.mxu0 0.0
    %601 = vmatprep.subr.mxu0 0.0
    %602 = vmatpush2.msra.mxu0 0.0
    %603 = vmatprep.subr.mxu0 0.0
    %604 = vmatpush2.msra.mxu0 0.0
    %605 = vmatprep.subr.mxu0 0.0
    %606 = vmatpush2.msra.mxu0 0.0
    %607 = vmatprep.subr.mxu0 0.0
    %608 = vmatpush2.msra.mxu0 0.0
    %609 = vmatprep.subr.mxu0 0.0
    %610 = vmatpush2.msra.mxu0 0.0
    %611 = vmatprep.subr.mxu0 0.0
    %612 = vmatpush2.msra.mxu0 0.0
    %613 = vmatprep.subr.mxu0 0.0
    %614 = vmatpush2.msra.mxu0 0.0
    %615 = vmatprep.subr.mxu0 0.0
    %616 = vmatpush2.msra.mxu0 0.0
    %617 = vmatprep.mubr.f32.mxu0 0.0
    %618 = vmatmul.mubr.f32.gmra.mxu0 %v551
    %v619 = vpop.f32.mrf.mxu0
    %v620 = vadd.f32 %v549, %v619
    %v621 = vpop.f32.mrf.mxu0
    %622 = vdwg.mxu0
    %623 = vst.msk [vmem:[#allocation2] sm:$0xff] %vm105, %v620
    // Predicated region
    $region10: #{forward.1} parent=1 // pred_check
      _
    $region11: #{forward.1} parent=1 // pred_check_branch
      %625 = sbr.rel (0) target = $region13
    $region12: #{forward.1} parent=1 // pred_region
      %s627 = ssub.s32 128, 128
      %628 = vsyncadd [#allocation3], %s627
      %s630 = sshll.u32 [#allocation2], 4
      %s631 = int_to_ptr.vmem [resolvable:$true] %s630
      %633 = dma.vmem_to_hbm [thread:$0]  %s631, 128, %s2, [#allocation3]
    $region13: #{forward.1} parent=1 // pred_fallthru
      _
    // Predicated region
    $region14: #{forward.1} parent=1 // pred_check
      _
    $region15: #{forward.1} parent=1 // pred_check_branch
      %635 = sbr.rel (0) target = $region17
    $region16: #{forward.1} parent=1 // pred_region
      %636 = dma.done [#allocation3], 128
    $region17: #{forward.1} parent=1 // pred_fallthru
      _
    %637 = vsyncpa [#allocation3], 1

</llo_original>
